<compile_context>
chip_gen: v7x
topology: tpu7x:2x2x1
jax: 0.10.0
libtpu: 0.0.40
codegen_flags: <defaults>
</compile_context>

<pallas_src>
import functools

import jax
import jax.numpy as jnp
import numpy as np
from jax.experimental import pallas as pl
from jax.experimental.pallas import tpu as pltpu


def _round_up(a, b):
    return (a + b - 1) // b * b


# ----------------------------- Pallas kernel --------------------------------
def _lbc_kernel(bias_ref, patches_ref, w_ref, sel_ref, o_ref):
    # patches_ref: (tm, KK) bf16, w_ref: (KK, NLBP) bf16,
    # sel_ref: (NLBP, OC_pad) bf16, o_ref: (tm, OC_pad) bf16
    acts = jnp.dot(patches_ref[...], w_ref[...],
                   preferred_element_type=jnp.float32)          # bf16 x bf16 MXU, f32 acc
    acts = jnp.maximum(acts, 0.0)                               # ReLU in f32 (VPU)
    # Grouped 1x1 conv as a second bf16 matmul (single MXU pass; the resident
    # selector stays bf16 so nothing is re-converted per grid step).
    out = jnp.dot(acts.astype(jnp.bfloat16), sel_ref[...],
                  preferred_element_type=jnp.float32)
    # NOTE(v6e): if the vex/MXU slot is still the binding unit after the bf16
    # fix, this 64-deep/8-useful-lane matmul can be replaced by a VPU/XLU
    # group-reduce (scale by a hoisted broadcast of a, 3x roll+add over NW=8).
    o_ref[...] = (out + bias_ref[0, 0]).astype(o_ref.dtype)     # bias add, bf16 store


def _im2col(x_nchw, k):
    """(N, C, H, W) -> (N*Ho*Wo, C*k*k) with feature order (cin, kh, kw)."""
    N, C, H, W = x_nchw.shape
    Ho, Wo = H - k + 1, W - k + 1
    cols = []
    for i in range(k):
        for j in range(k):
            cols.append(x_nchw[:, :, i:i + Ho, j:j + Wo])       # (N, C, Ho, Wo)
    patches = jnp.stack(cols, axis=0).reshape(k, k, N, C, Ho, Wo)
    patches = patches.transpose(2, 4, 5, 3, 0, 1)               # (N, Ho, Wo, C, kh, kw)
    return patches.reshape(N * Ho * Wo, C * k * k), Ho, Wo


@functools.partial(jax.jit, static_argnames=("num_weights", "out_channels", "kernel_size"))
def layer_lbc_forward(x, w_lbp, a_1x1, b_1x1, *, num_weights, out_channels, kernel_size):
    """Pallas implementation of LayerLBC.forward.

    x      : (N, Cin, H, W)  float32, NCHW (PyTorch convention)
    w_lbp  : (OC*NW, Cin, K, K) fixed ternary weights of ConvLBC
    a_1x1  : (NW,)  weights of the 1x1 conv
    b_1x1  : ()     scalar bias of the 1x1 conv
    returns: (N, OC, H_out, W_out) float32
    """
    N, Cin, H, W = x.shape
    K = kernel_size
    OC, NW = out_channels, num_weights
    NLBP = OC * NW
    KK = Cin * K * K

    # TODO(synk): at production sizes, skip this HBM im2col (K^2 read blowup +
    # relayout/cast pre-pass) and build the (tm, KK) tile in-kernel from a raw
    # NCHW band (memory_space=pl.ANY + pltpu.make_async_copy), or reformulate
    # as K*K shifted (tm, Cin) x (Cin, NLBP) matmuls over an 'arbitrary' axis.
    patches, Ho, Wo = _im2col(x, K)                              # (M, KK) f32
    M = N * Ho * Wo

    OC_pad = _round_up(OC, 128)                                  # lane-dense output store
    # TODO(synk): at scale, lane-pack 16 spatial rows per 128-lane output slab
    # (out_shape (M_pad//16, 16*OC)) instead of zero-padding OC 8 -> 128 lanes.

    # --- row tile sized from actual VMEM bytes, not a fixed constant ---------
    # patches tile: tm*KK*2 B x2 buffers; out tile: tm*OC_pad*2 B x2 buffers;
    # resident weight blocks single-buffered (pl.Buffered(1)).
    VMEM_BUDGET = 24 << 20        # headroom under the 32 MiB scoped default (v7x-safe)
    TM_CAP = 2048                 # tile sweeps: >=1024 rows reaches ~86% of HBM roofline
    resident_bytes = 2 * (KK * NLBP + NLBP * OC_pad)
    bytes_per_row = 2 * (2 * KK) + 2 * (2 * OC_pad)
    tm_fit = max(16, (VMEM_BUDGET - resident_bytes) // bytes_per_row)
    tm_target = min(TM_CAP, (tm_fit // 16) * 16)

    M_pad = _round_up(M, 8)
    if M_pad <= tm_target:
        tm = M_pad                # single grid step at this size (tm = M = 392)
    else:
        tm = tm_target
        M_pad = _round_up(M, tm)
    grid = (M_pad // tm,)

    # bf16 at the boundary (halves HBM traffic on the im2col-inflated patches
    # stream; ternary LBC weights are exact in bf16). Both matmuls accumulate f32.
    patches = jnp.pad(patches, ((0, M_pad - M), (0, 0))).astype(jnp.bfloat16)
    w_mat = w_lbp.reshape(NLBP, KK).T.astype(jnp.bfloat16)       # (KK, NLBP)
    # Selector: sel[oc*NW + w, oc] = a[w]  (implements the grouped 1x1 conv).
    sel = jnp.kron(jnp.eye(OC, dtype=jnp.float32), a_1x1.reshape(NW, 1))   # (NLBP, OC)
    sel = jnp.pad(sel, ((0, 0), (0, OC_pad - OC))).astype(jnp.bfloat16)    # (NLBP, OC_pad)
    bias2d = b_1x1.reshape(1, 1).astype(jnp.float32)

    out_flat = pl.pallas_call(
        _lbc_kernel,
        out_shape=jax.ShapeDtypeStruct((M_pad, OC_pad), jnp.bfloat16),
        grid_spec=pltpu.PrefetchScalarGridSpec(
            num_scalar_prefetch=0,
            grid=grid,
            in_specs=[
                pl.BlockSpec(memory_space=pltpu.MemorySpace.SMEM),    # bias (1,1)
                pl.BlockSpec((tm, KK), lambda i: (i, 0)),             # patches tile
                pl.BlockSpec((KK, NLBP), lambda i: (0, 0),
                             pipeline_mode=pl.Buffered(1)),           # resident LBC weights
                pl.BlockSpec((NLBP, OC_pad), lambda i: (0, 0),
                             pipeline_mode=pl.Buffered(1)),           # resident selector
            ],
            out_specs=pl.BlockSpec((tm, OC_pad), lambda i: (i, 0)),
        ),
        compiler_params=pltpu.CompilerParams(
            dimension_semantics=("parallel",),        # shard row tiles over v7x's 2 TCs
            vmem_limit_bytes=32 * 1024 * 1024),
    )(bias2d, patches, w_mat, sel)

    # Padded rows/cols contain the bias value (bias added after zero matmuls);
    # harmless because we slice [:M, :OC] before any reuse.
    out = out_flat[:M, :OC].astype(jnp.float32)
    return out.reshape(N, Ho, Wo, OC).transpose(0, 3, 1, 2)      # -> NCHW


# ----------------------------- reference (plain JAX) -------------------------
def layer_lbc_reference(x, w_lbp, a_1x1, b_1x1, *, num_weights, out_channels,
                        act_dtype=jnp.float32, out_dtype=jnp.float32):
    y = jax.lax.conv_general_dilated(
        x, w_lbp, window_strides=(1, 1), padding="VALID",
        dimension_numbers=("NCHW", "OIHW", "NCHW"),
        precision=jax.lax.Precision.HIGHEST)
    y = jnp.maximum(y, 0.0)
    y = y.astype(act_dtype).astype(jnp.float32)      # mirror the kernel's acts->bf16 cast
    N = x.shape[0]
    Ho, Wo = y.shape[2], y.shape[3]
    y = y.reshape(N, out_channels, num_weights, Ho, Wo)
    out = jnp.einsum("nowhv,w->nohv", y, a_1x1,
                     precision=jax.lax.Precision.HIGHEST) + b_1x1
    return out.astype(out_dtype).astype(jnp.float32)  # mirror the kernel's bf16 store


# ----------------------------------- main ------------------------------------
if __name__ == "__main__":
    # Small config consistent with LayerLBC(in_channels=4, out_channels=8,
    # num_weights=8, sparsity=0.5, kernel_size=3, padding=0)
    N, Cin, H, W = 2, 4, 16, 16
    OC, NW, K = 8, 8, 3
    sparsity = 0.5

    key = jax.random.PRNGKey(0)
    k_x, k_sign, k_mask, k_a, k_b = jax.random.split(key, 5)

    x = jax.random.normal(k_x, (N, Cin, H, W), dtype=jnp.float32)

    # ConvLBC fixed ternary anchor weights: bernoulli(0.5)*2-1, zeroed where
    # rand > sparsity (matches the PyTorch init semantics, deterministic here).
    w_shape = (OC * NW, Cin, K, K)
    signs = jax.random.bernoulli(k_sign, 0.5, w_shape).astype(jnp.float32) * 2.0 - 1.0
    inactive = jax.random.uniform(k_mask, w_shape) > sparsity
    w_lbp = jnp.where(inactive, 0.0, signs).astype(jnp.float32)

    # conv_1x1 (num_weights -> 1) learnable params, deterministic init
    # (PyTorch default: uniform(-1/sqrt(fan_in), 1/sqrt(fan_in)), fan_in = NW).
    bound = 1.0 / jnp.sqrt(jnp.float32(NW))
    a_1x1 = jax.random.uniform(k_a, (NW,), minval=-bound, maxval=bound, dtype=jnp.float32)
    b_1x1 = jax.random.uniform(k_b, (), minval=-bound, maxval=bound, dtype=jnp.float32)

    out = layer_lbc_forward(
        x, w_lbp, a_1x1, b_1x1,
        num_weights=NW, out_channels=OC, kernel_size=K)
    out = jax.block_until_ready(out)
    assert out.shape == (N, OC, H - K + 1, W - K + 1), out.shape

    # The kernel feeds the MXU bf16 inputs (ternary LBC weights exact in bf16),
    # casts the post-ReLU activations to bf16 for the grouped 1x1 matmul, and
    # stores the output in bf16 — so the reference quantizes at the same
    # points; the remaining difference is accumulation order.
    x_q = x.astype(jnp.bfloat16).astype(jnp.float32)
    a_q = a_1x1.astype(jnp.bfloat16).astype(jnp.float32)
    ref = layer_lbc_reference(x_q, w_lbp, a_q, b_1x1,
                              num_weights=NW, out_channels=OC,
                              act_dtype=jnp.bfloat16, out_dtype=jnp.bfloat16)
    ref = jax.block_until_ready(ref)

    np.testing.assert_allclose(np.asarray(out), np.asarray(ref), rtol=5e-3, atol=5e-3)

    print("KERNEL_OK")
</pallas_src>

<mosaic_0001>
module attributes {stable_mosaic.version = 11 : i64} {
  func.func @_lbc_kernel(%arg0: i32, %arg1: memref<1x1xf32, #tpu.memory_space<smem>>, %arg2: memref<392x36xbf16, #tpu.memory_space<vmem>>, %arg3: memref<36x64xbf16, #tpu.memory_space<vmem>>, %arg4: memref<64x128xbf16, #tpu.memory_space<vmem>>, %arg5: memref<392x128xbf16, #tpu.memory_space<vmem>>) attributes {dimension_semantics = [#tpu.dimension_semantics<parallel>], iteration_bounds = array<i64: 1>, scalar_prefetch = 0 : i64, scratch_operands = 0 : i64, tpu.core_type = #tpu.core_type<tc>, window_params = [{transform_indices = @transform_0, window_bounds = array<i64: 1, 1>}, {transform_indices = @transform_1, window_bounds = array<i64: 392, 36>}, {pipeline_mode = #tpu.pipeline_mode<synchronous>, transform_indices = @transform_2, window_bounds = array<i64: 36, 64>}, {pipeline_mode = #tpu.pipeline_mode<synchronous>, transform_indices = @transform_3, window_bounds = array<i64: 64, 128>}, {transform_indices = @transform_4, window_bounds = array<i64: 392, 128>}]} {
    %c0 = arith.constant 0 : index
    %c0_0 = arith.constant 0 : index
    %0 = vector.load %arg2[%c0, %c0_0] : memref<392x36xbf16, #tpu.memory_space<vmem>>, vector<392x36xbf16>
    %c0_1 = arith.constant 0 : index
    %c0_2 = arith.constant 0 : index
    %1 = vector.load %arg3[%c0_1, %c0_2] : memref<36x64xbf16, #tpu.memory_space<vmem>>, vector<36x64xbf16>
    %cst = arith.constant dense<0.000000e+00> : vector<392x64xf32>
    %2 = tpu.matmul %0, %1, %cst {dimension_numbers = #tpu.dot_dimension_numbers<[1], [0], [0], [1], [0, 0, 1, 1], [], []>} : vector<392x36xbf16>, vector<36x64xbf16>, vector<392x64xf32> -> vector<392x64xf32>
    %cst_3 = arith.constant 0.000000e+00 : f32
    %3 = vector.broadcast %cst_3 : f32 to vector<392x64xf32>
    %4 = arith.maximumf %2, %3 : vector<392x64xf32>
    %5 = arith.truncf %4 : vector<392x64xf32> to vector<392x64xbf16>
    %c0_4 = arith.constant 0 : index
    %c0_5 = arith.constant 0 : index
    %6 = vector.load %arg4[%c0_4, %c0_5] : memref<64x128xbf16, #tpu.memory_space<vmem>>, vector<64x128xbf16>
    %cst_6 = arith.constant dense<0.000000e+00> : vector<392x128xf32>
    %7 = tpu.matmul %5, %6, %cst_6 {dimension_numbers = #tpu.dot_dimension_numbers<[1], [0], [0], [1], [0, 0, 1, 1], [], []>} : vector<392x64xbf16>, vector<64x128xbf16>, vector<392x128xf32> -> vector<392x128xf32>
    %c0_7 = arith.constant 0 : index
    %c0_8 = arith.constant 0 : index
    %8 = memref.load %arg1[%c0_7, %c0_8] : memref<1x1xf32, #tpu.memory_space<smem>>
    %9 = vector.broadcast %8 : f32 to vector<392x128xf32>
    %10 = arith.addf %7, %9 : vector<392x128xf32>
    %11 = arith.truncf %10 : vector<392x128xf32> to vector<392x128xbf16>
    %c0_9 = arith.constant 0 : index
    %c0_10 = arith.constant 0 : index
    %12 = vector.load %arg5[%c0_9, %c0_10] : memref<392x128xbf16, #tpu.memory_space<vmem>>, vector<392x128xbf16>
    tpu.vector_store %arg5[%c0_9, %c0_10], %11 {strides = array<i32>} : memref<392x128xbf16, #tpu.memory_space<vmem>>, vector<392x128xbf16>,
    return
  }
  func.func @transform_0(%arg0: i32) -> (i32, i32) {
    %c0_i32 = arith.constant 0 : i32
    %c0_i32_0 = arith.constant 0 : i32
    %c0_i32_1 = arith.constant 0 : i32
    return %c0_i32, %c0_i32_0 : i32, i32
  }
  func.func @transform_1(%arg0: i32) -> (i32, i32) {
    %c0_i32 = arith.constant 0 : i32
    %c0_i32_0 = arith.constant 0 : i32
    return %arg0, %c0_i32 : i32, i32
  }
  func.func @transform_2(%arg0: i32) -> (i32, i32) {
    %c0_i32 = arith.constant 0 : i32
    %c0_i32_0 = arith.constant 0 : i32
    %c0_i32_1 = arith.constant 0 : i32
    return %c0_i32, %c0_i32_0 : i32, i32
  }
  func.func @transform_3(%arg0: i32) -> (i32, i32) {
    %c0_i32 = arith.constant 0 : i32
    %c0_i32_0 = arith.constant 0 : i32
    %c0_i32_1 = arith.constant 0 : i32
    return %c0_i32, %c0_i32_0 : i32, i32
  }
  func.func @transform_4(%arg0: i32) -> (i32, i32) {
    %c0_i32 = arith.constant 0 : i32
    %c0_i32_0 = arith.constant 0 : i32
    return %arg0, %c0_i32 : i32, i32
  }
}

</mosaic_0001>

<llo_original>
// kernel: layer_lbc_forward.1
$region0: #{layer_lbc_forward.1}
  #allocation0 [shape = 'u32[]', space=smem, size = 0x4, offset = 0x4, fixed_abs, tag = 'smem constant byte address 0x4 - core index']
  #allocation1 [shape = 'u32[144,128]{1,0:T(1,128)}', space=vmem, size = 0x12000, scoped, tag = 'internal scratch']
  #allocation2 [shape = 'f32[1,1]{1,0:T(1,128)S(6)}', space=smem, size = 0x200, scoped, tag = 'scoped memory for layer_lbc_forward.1']
  %s0 = inlined_call_operand.<no memory space> [shape: f32[1,1], index: 0, kind: input, shape index: {}]
  %s1 = inlined_call_operand.vmem [shape: bf16[392,36], index: 1, kind: input, shape index: {}]
  %s2 = inlined_call_operand.vmem [shape: bf16[36,64], index: 2, kind: input, shape index: {}]
  %s3 = inlined_call_operand.vmem [shape: bf16[64,128], index: 3, kind: input, shape index: {}]
  %s4 = inlined_call_operand.vmem [shape: bf16[392,128], index: 4, kind: output, shape index: {}]
  %s5 = sld [smem:[#allocation0]]
  $region26: #{layer_lbc_forward.1} parent=0
    _
  %s7 = ssub.s32 1, %s5
  %s8 = scalar_select 0, %s7, %s5
  %9 = sst [smem:[#allocation2]] %s0
  // Predicated region
  $region2: #{layer_lbc_forward.1} parent=0 // pred_check
    _
  $region3: #{layer_lbc_forward.1} parent=0 // pred_check_branch
    %11 = sbr.rel (0) target = $region5
  $region4: #{layer_lbc_forward.1} parent=0 // pred_region
    _
  $region5: #{layer_lbc_forward.1} parent=0 // pred_fallthru
    _
  // Predicated region
  $region6: #{layer_lbc_forward.1} parent=0 // pred_check
    _
  $region7: #{layer_lbc_forward.1} parent=0 // pred_check_branch
    %13 = sbr.rel (0) target = $region9
  $region8: #{layer_lbc_forward.1} parent=0 // pred_region
    _
  $region9: #{layer_lbc_forward.1} parent=0 // pred_fallthru
    _
  // Predicated region
  $region10: #{layer_lbc_forward.1} parent=0 // pred_check
    _
  $region11: #{layer_lbc_forward.1} parent=0 // pred_check_branch
    %15 = sbr.rel (0) target = $region13
  $region12: #{layer_lbc_forward.1} parent=0 // pred_region
    _
  $region13: #{layer_lbc_forward.1} parent=0 // pred_fallthru
    _
  // Predicated region
  $region14: #{layer_lbc_forward.1} parent=0 // pred_check
    _
  $region15: #{layer_lbc_forward.1} parent=0 // pred_check_branch
    %17 = sbr.rel (0) target = $region17
  $region16: #{layer_lbc_forward.1} parent=0 // pred_region
    _
  $region17: #{layer_lbc_forward.1} parent=0 // pred_fallthru
    _
  %v19 = vld [vmem:[%s1] sm:$0xf]
  %v20 = vld [vmem:[%s1 + $0x4] sm:$0xf]
  %v21 = vld [vmem:[%s1 + $0x8] sm:$0xf]
  %v22 = vld [vmem:[%s1 + $0xc] sm:$0xf]
  %v23 = vld [vmem:[%s1 + $0x10] sm:$0xf]
  %v24 = vld [vmem:[%s1 + $0x14] sm:$0xf]
  %v25 = vld [vmem:[%s1 + $0x18] sm:$0xf]
  %v26 = vld [vmem:[%s1 + $0x1c] sm:$0xf]
  %v27 = vld [vmem:[%s1 + $0x20] sm:$0xf]
  %v28 = vld [vmem:[%s1 + $0x24] sm:$0xf]
  %v29 = vld [vmem:[%s1 + $0x28] sm:$0xf]
  %v30 = vld [vmem:[%s1 + $0x2c] sm:$0xf]
  %v31 = vld [vmem:[%s1 + $0x30] sm:$0xf]
  %v32 = vld [vmem:[%s1 + $0x34] sm:$0xf]
  %v33 = vld [vmem:[%s1 + $0x38] sm:$0xf]
  %v34 = vld [vmem:[%s1 + $0x3c] sm:$0xf]
  %v35 = vld [vmem:[%s1 + $0x40] sm:$0xf]
  %v36 = vld [vmem:[%s1 + $0x44] sm:$0xf]
  %v37 = vld [vmem:[%s1 + $0x48] sm:$0xf]
  %v38 = vld [vmem:[%s1 + $0x4c] sm:$0xf]
  %v39 = vld [vmem:[%s1 + $0x50] sm:$0xf]
  %v40 = vld [vmem:[%s1 + $0x54] sm:$0xf]
  %v41 = vld [vmem:[%s1 + $0x58] sm:$0xf]
  %v42 = vld [vmem:[%s1 + $0x5c] sm:$0xf]
  %v43 = vld [vmem:[%s1 + $0x60] sm:$0xf]
  %v44 = vld [vmem:[%s1 + $0x64] sm:$0xf]
  %v45 = vld [vmem:[%s1 + $0x68] sm:$0xf]
  %v46 = vld [vmem:[%s1 + $0x6c] sm:$0xf]
  %v47 = vld [vmem:[%s1 + $0x70] sm:$0xf]
  %v48 = vld [vmem:[%s1 + $0x74] sm:$0xf]
  %v49 = vld [vmem:[%s1 + $0x78] sm:$0xf]
  %v50 = vld [vmem:[%s1 + $0x7c] sm:$0xf]
  %v51 = vld [vmem:[%s1 + $0x80] sm:$0xf]
  %v52 = vld [vmem:[%s1 + $0x84] sm:$0xf]
  %v53 = vld [vmem:[%s1 + $0x88] sm:$0xf]
  %v54 = vld [vmem:[%s1 + $0x8c] sm:$0xf]
  %v55 = vld [vmem:[%s1 + $0x90] sm:$0xf]
  %v56 = vld [vmem:[%s1 + $0x94] sm:$0xf]
  %v57 = vld [vmem:[%s1 + $0x98] sm:$0xf]
  %v58 = vld [vmem:[%s1 + $0x9c] sm:$0xf]
  %v59 = vld [vmem:[%s1 + $0xa0] sm:$0xf]
  %v60 = vld [vmem:[%s1 + $0xa4] sm:$0xf]
  %v61 = vld [vmem:[%s1 + $0xa8] sm:$0xf]
  %v62 = vld [vmem:[%s1 + $0xac] sm:$0xf]
  %v63 = vld [vmem:[%s1 + $0xb0] sm:$0xf]
  %v64 = vld [vmem:[%s1 + $0xb4] sm:$0xf]
  %v65 = vld [vmem:[%s1 + $0xb8] sm:$0xf]
  %v66 = vld [vmem:[%s1 + $0xbc] sm:$0xf]
  %v67 = vld [vmem:[%s1 + $0xc0] sm:$0xf]
  %v68 = vld [vmem:[%s2] sm:$0xf]
  %v69 = vld [vmem:[%s2 + $0x4] sm:$0xf]
  %v70 = vld [vmem:[%s2 + $0x8] sm:$0xf]
  %v71 = vld [vmem:[%s2 + $0xc] sm:$0xf]
  %v72 = vld [vmem:[%s2 + $0x10] sm:$0x3]
  %v122 = vunpack.c.l.b16 %v19
  %v123 = vunpack.c.l.b16 %v20
  %v124 = vunpack.c.l.b16 %v21
  %v125 = vunpack.c.l.b16 %v22
  %v126 = vunpack.c.l.b16 %v23
  %v127 = vunpack.c.l.b16 %v24
  %v128 = vunpack.c.l.b16 %v25
  %v129 = vunpack.c.l.b16 %v26
  %v130 = vunpack.c.l.b16 %v27
  %v131 = vunpack.c.l.b16 %v28
  %v132 = vunpack.c.l.b16 %v29
  %v133 = vunpack.c.l.b16 %v30
  %v134 = vunpack.c.l.b16 %v31
  %v135 = vunpack.c.l.b16 %v32
  %v136 = vunpack.c.l.b16 %v33
  %v137 = vunpack.c.l.b16 %v34
  %v138 = vunpack.c.l.b16 %v35
  %v139 = vunpack.c.l.b16 %v36
  %v140 = vunpack.c.l.b16 %v37
  %v141 = vunpack.c.l.b16 %v38
  %v142 = vunpack.c.l.b16 %v39
  %v143 = vunpack.c.l.b16 %v40
  %v144 = vunpack.c.l.b16 %v41
  %v145 = vunpack.c.l.b16 %v42
  %v146 = vunpack.c.l.b16 %v43
  %v147 = vunpack.c.l.b16 %v44
  %v148 = vunpack.c.l.b16 %v45
  %v149 = vunpack.c.l.b16 %v46
  %v150 = vunpack.c.l.b16 %v47
  %v151 = vunpack.c.l.b16 %v48
  %v152 = vunpack.c.l.b16 %v49
  %v153 = vunpack.c.l.b16 %v50
  %v154 = vunpack.c.l.b16 %v51
  %v155 = vunpack.c.l.b16 %v52
  %v156 = vunpack.c.l.b16 %v53
  %v157 = vunpack.c.l.b16 %v54
  %v158 = vunpack.c.l.b16 %v55
  %v159 = vunpack.c.l.b16 %v56
  %v160 = vunpack.c.l.b16 %v57
  %v161 = vunpack.c.l.b16 %v58
  %v162 = vunpack.c.l.b16 %v59
  %v163 = vunpack.c.l.b16 %v60
  %v164 = vunpack.c.l.b16 %v61
  %v165 = vunpack.c.l.b16 %v62
  %v166 = vunpack.c.l.b16 %v63
  %v167 = vunpack.c.l.b16 %v64
  %v168 = vunpack.c.l.b16 %v65
  %v169 = vunpack.c.l.b16 %v66
  %v170 = vunpack.c.l.b16 %v67
  %v171 = vpack.c.b16 %v123, %v122
  %v172 = vpack.c.b16 %v125, %v124
  %v173 = vpack.c.b16 %v127, %v126
  %v174 = vpack.c.b16 %v129, %v128
  %v175 = vpack.c.b16 %v131, %v130
  %v176 = vpack.c.b16 %v133, %v132
  %v177 = vpack.c.b16 %v135, %v134
  %v178 = vpack.c.b16 %v137, %v136
  %v179 = vpack.c.b16 %v139, %v138
  %v180 = vpack.c.b16 %v141, %v140
  %v181 = vpack.c.b16 %v143, %v142
  %v182 = vpack.c.b16 %v145, %v144
  %v183 = vpack.c.b16 %v147, %v146
  %v184 = vpack.c.b16 %v149, %v148
  %v185 = vpack.c.b16 %v151, %v150
  %v186 = vpack.c.b16 %v153, %v152
  %v187 = vpack.c.b16 %v155, %v154
  %v188 = vpack.c.b16 %v157, %v156
  %v189 = vpack.c.b16 %v159, %v158
  %v190 = vpack.c.b16 %v161, %v160
  %v191 = vpack.c.b16 %v163, %v162
  %v192 = vpack.c.b16 %v165, %v164
  %v193 = vpack.c.b16 %v167, %v166
  %v194 = vpack.c.b16 %v169, %v168
  %v195 = vpack.c.b16 %v170, %v170
  %v201 = vunpack.c.l.b16 %v68
  %v202 = vunpack.c.l.b16 %v69
  %v203 = vunpack.c.l.b16 %v70
  %v204 = vunpack.c.l.b16 %v71
  %v205 = vunpack.c.l.b16 %v72
  %v206 = vpack.c.b16 %v202, %v201
  %v207 = vpack.c.b16 %v204, %v203
  %v208 = vpack.c.b16 %v205, %v205
  %vm211 = vcmask 293888
  %v213 = vsel %vm211, %v171, 0
  %v216 = vsel %vm211, %v172, 0
  %v219 = vsel %vm211, %v173, 0
  %v222 = vsel %vm211, %v174, 0
  %v225 = vsel %vm211, %v175, 0
  %v228 = vsel %vm211, %v176, 0
  %v231 = vsel %vm211, %v177, 0
  %v234 = vsel %vm211, %v178, 0
  %v237 = vsel %vm211, %v179, 0
  %v240 = vsel %vm211, %v180, 0
  %v243 = vsel %vm211, %v181, 0
  %v246 = vsel %vm211, %v182, 0
  %v249 = vsel %vm211, %v183, 0
  %v252 = vsel %vm211, %v184, 0
  %v255 = vsel %vm211, %v185, 0
  %v258 = vsel %vm211, %v186, 0
  %v261 = vsel %vm211, %v187, 0
  %v264 = vsel %vm211, %v188, 0
  %v267 = vsel %vm211, %v189, 0
  %v270 = vsel %vm211, %v190, 0
  %v273 = vsel %vm211, %v191, 0
  %v276 = vsel %vm211, %v192, 0
  %v279 = vsel %vm211, %v193, 0
  %v282 = vsel %vm211, %v194, 0
  %v285 = vsel %vm211, %v195, 0
  %vm287 = vcmask 1041408
  %v289 = vsel %vm287, %v208, 0
  %291 = vmatprep.subr.bf16.mxu0 0
  %292 = vmatpush1.bf16.msra.mxu0 %v206
  %293 = vmatprep.subr.bf16.mxu0 0
  %294 = vmatpush1.bf16.msra.mxu0 %v207
  %295 = vmatprep.subr.bf16.mxu0 0
  %296 = vmatpush1.bf16.msra.mxu0 %v289
  %297 = vmatprep.subr.bf16.mxu0 0
  %298 = vmatpush1.bf16.msra.mxu0 0
  %299 = vmatprep.subr.bf16.mxu0 0
  %300 = vmatpush1.bf16.msra.mxu0 0
  %301 = vmatprep.subr.bf16.mxu0 0
  %302 = vmatpush1.bf16.msra.mxu0 0
  %303 = vmatprep.subr.bf16.mxu0 0
  %304 = vmatpush1.bf16.msra.mxu0 0
  %305 = vmatprep.subr.bf16.mxu0 0
  %306 = vmatpush1.bf16.msra.mxu0 0
  %307 = vmatprep.subr.bf16.mxu0 0
  %308 = vmatpush1.bf16.msra.mxu0 0
  %309 = vmatprep.subr.bf16.mxu0 0
  %310 = vmatpush1.bf16.msra.mxu0 0
  %311 = vmatprep.subr.bf16.mxu0 0
  %312 = vmatpush1.bf16.msra.mxu0 0
  %313 = vmatprep.subr.bf16.mxu0 0
  %314 = vmatpush1.bf16.msra.mxu0 0
  %315 = vmatprep.subr.bf16.mxu0 0
  %316 = vmatpush1.bf16.msra.mxu0 0
  %317 = vmatprep.subr.bf16.mxu0 0
  %318 = vmatpush1.bf16.msra.mxu0 0
  %319 = vmatprep.subr.bf16.mxu0 0
  %320 = vmatpush1.bf16.msra.mxu0 0
  %321 = vmatprep.subr.bf16.mxu0 0
  %322 = vmatpush1.bf16.msra.mxu0 0
  %323 = vmatprep.mubr.bf16.mxu0 0
  %324 = vmatmul.mubr.bf16.gmra.mrb[0].mxu0 %v213
  %v325 = vpop.f32.mrb[0].mxu0
  %v326 = vadd.f32 0.0, %v325
  %v327 = vpop.f32.mrb[0].mxu0
  %v328 = vpop.f32.mrb[0].mxu0
  %v329 = vadd.f32 0.0, %v328
  %v330 = vpop.f32.mrb[0].mxu0
  %331 = vmatprep.mubr.bf16.mxu0 0
  %332 = vmatmul.mubr.bf16.gmra.mrb[0].mxu0 %v216
  %v333 = vpop.f32.mrb[0].mxu0
  %v334 = vadd.f32 0.0, %v333
  %v335 = vpop.f32.mrb[0].mxu0
  %v336 = vpop.f32.mrb[0].mxu0
  %v337 = vadd.f32 0.0, %v336
  %v338 = vpop.f32.mrb[0].mxu0
  %339 = vmatprep.mubr.bf16.mxu0 0
  %340 = vmatmul.mubr.bf16.gmra.mrb[0].mxu0 %v219
  %v341 = vpop.f32.mrb[0].mxu0
  %v342 = vadd.f32 0.0, %v341
  %v343 = vpop.f32.mrb[0].mxu0
  %v344 = vpop.f32.mrb[0].mxu0
  %v345 = vadd.f32 0.0, %v344
  %v346 = vpop.f32.mrb[0].mxu0
  %347 = vmatprep.mubr.bf16.mxu0 0
  %348 = vmatmul.mubr.bf16.gmra.mrb[0].mxu0 %v222
  %v349 = vpop.f32.mrb[0].mxu0
  %v350 = vadd.f32 0.0, %v349
  %v351 = vpop.f32.mrb[0].mxu0
  %v352 = vpop.f32.mrb[0].mxu0
  %v353 = vadd.f32 0.0, %v352
  %v354 = vpop.f32.mrb[0].mxu0
  %355 = vmatprep.mubr.bf16.mxu0 0
  %356 = vmatmul.mubr.bf16.gmra.mrb[0].mxu0 %v225
  %v357 = vpop.f32.mrb[0].mxu0
  %v358 = vadd.f32 0.0, %v357
  %v359 = vpop.f32.mrb[0].mxu0
  %v360 = vpop.f32.mrb[0].mxu0
  %v361 = vadd.f32 0.0, %v360
  %v362 = vpop.f32.mrb[0].mxu0
  %363 = vmatprep.mubr.bf16.mxu0 0
  %364 = vmatmul.mubr.bf16.gmra.mrb[0].mxu0 %v228
  %v365 = vpop.f32.mrb[0].mxu0
  %v366 = vadd.f32 0.0, %v365
  %v367 = vpop.f32.mrb[0].mxu0
  %v368 = vpop.f32.mrb[0].mxu0
  %v369 = vadd.f32 0.0, %v368
  %v370 = vpop.f32.mrb[0].mxu0
  %371 = vmatprep.mubr.bf16.mxu0 0
  %372 = vmatmul.mubr.bf16.gmra.mrb[0].mxu0 %v231
  %v373 = vpop.f32.mrb[0].mxu0
  %v374 = vadd.f32 0.0, %v373
  %v375 = vpop.f32.mrb[0].mxu0
  %v376 = vpop.f32.mrb[0].mxu0
  %v377 = vadd.f32 0.0, %v376
  %v378 = vpop.f32.mrb[0].mxu0
  %379 = vmatprep.mubr.bf16.mxu0 0
  %380 = vmatmul.mubr.bf16.gmra.mrb[0].mxu0 %v234
  %v381 = vpop.f32.mrb[0].mxu0
  %v382 = vadd.f32 0.0, %v381
  %v383 = vpop.f32.mrb[0].mxu0
  %v384 = vpop.f32.mrb[0].mxu0
  %v385 = vadd.f32 0.0, %v384
  %v386 = vpop.f32.mrb[0].mxu0
  %387 = vmatprep.mubr.bf16.mxu0 0
  %388 = vmatmul.mubr.bf16.gmra.mrb[0].mxu0 %v237
  %v389 = vpop.f32.mrb[0].mxu0
  %v390 = vadd.f32 0.0, %v389
  %v391 = vpop.f32.mrb[0].mxu0
  %v392 = vpop.f32.mrb[0].mxu0
  %v393 = vadd.f32 0.0, %v392
  %v394 = vpop.f32.mrb[0].mxu0
  %395 = vmatprep.mubr.bf16.mxu0 0
  %396 = vmatmul.mubr.bf16.gmra.mrb[0].mxu0 %v240
  %v397 = vpop.f32.mrb[0].mxu0
  %v398 = vadd.f32 0.0, %v397
  %v399 = vpop.f32.mrb[0].mxu0
  %v400 = vpop.f32.mrb[0].mxu0
  %v401 = vadd.f32 0.0, %v400
  %v402 = vpop.f32.mrb[0].mxu0
  %403 = vmatprep.mubr.bf16.mxu0 0
  %404 = vmatmul.mubr.bf16.gmra.mrb[0].mxu0 %v243
  %v405 = vpop.f32.mrb[0].mxu0
  %v406 = vadd.f32 0.0, %v405
  %v407 = vpop.f32.mrb[0].mxu0
  %v408 = vpop.f32.mrb[0].mxu0
  %v409 = vadd.f32 0.0, %v408
  %v410 = vpop.f32.mrb[0].mxu0
  %411 = vmatprep.mubr.bf16.mxu0 0
  %412 = vmatmul.mubr.bf16.gmra.mrb[0].mxu0 %v246
  %v413 = vpop.f32.mrb[0].mxu0
  %v414 = vadd.f32 0.0, %v413
  %v415 = vpop.f32.mrb[0].mxu0
  %v416 = vpop.f32.mrb[0].mxu0
  %v417 = vadd.f32 0.0, %v416
  %v418 = vpop.f32.mrb[0].mxu0
  %419 = vmatprep.mubr.bf16.mxu0 0
  %420 = vmatmul.mubr.bf16.gmra.mrb[0].mxu0 %v249
  %v421 = vpop.f32.mrb[0].mxu0
  %v422 = vadd.f32 0.0, %v421
  %v423 = vpop.f32.mrb[0].mxu0
  %v424 = vpop.f32.mrb[0].mxu0
  %v425 = vadd.f32 0.0, %v424
  %v426 = vpop.f32.mrb[0].mxu0
  %427 = vmatprep.mubr.bf16.mxu0 0
  %428 = vmatmul.mubr.bf16.gmra.mrb[0].mxu0 %v252
  %v429 = vpop.f32.mrb[0].mxu0
  %v430 = vadd.f32 0.0, %v429
  %v431 = vpop.f32.mrb[0].mxu0
  %v432 = vpop.f32.mrb[0].mxu0
  %v433 = vadd.f32 0.0, %v432
  %v434 = vpop.f32.mrb[0].mxu0
  %435 = vmatprep.mubr.bf16.mxu0 0
  %436 = vmatmul.mubr.bf16.gmra.mrb[0].mxu0 %v255
  %v437 = vpop.f32.mrb[0].mxu0
  %v438 = vadd.f32 0.0, %v437
  %v439 = vpop.f32.mrb[0].mxu0
  %v440 = vpop.f32.mrb[0].mxu0
  %v441 = vadd.f32 0.0, %v440
  %v442 = vpop.f32.mrb[0].mxu0
  %443 = vmatprep.mubr.bf16.mxu0 0
  %444 = vmatmul.mubr.bf16.gmra.mrb[0].mxu0 %v258
  %v445 = vpop.f32.mrb[0].mxu0
  %v446 = vadd.f32 0.0, %v445
  %v447 = vpop.f32.mrb[0].mxu0
  %v448 = vpop.f32.mrb[0].mxu0
  %v449 = vadd.f32 0.0, %v448
  %v450 = vpop.f32.mrb[0].mxu0
  %451 = vmatprep.mubr.bf16.mxu0 0
  %452 = vmatmul.mubr.bf16.gmra.mrb[0].mxu0 %v261
  %v453 = vpop.f32.mrb[0].mxu0
  %v454 = vadd.f32 0.0, %v453
  %v455 = vpop.f32.mrb[0].mxu0
  %v456 = vpop.f32.mrb[0].mxu0
  %v457 = vadd.f32 0.0, %v456
  %v458 = vpop.f32.mrb[0].mxu0
  %459 = vmatprep.mubr.bf16.mxu0 0
  %460 = vmatmul.mubr.bf16.gmra.mrb[0].mxu0 %v264
  %v461 = vpop.f32.mrb[0].mxu0
  %v462 = vadd.f32 0.0, %v461
  %v463 = vpop.f32.mrb[0].mxu0
  %v464 = vpop.f32.mrb[0].mxu0
  %v465 = vadd.f32 0.0, %v464
  %v466 = vpop.f32.mrb[0].mxu0
  %467 = vmatprep.mubr.bf16.mxu0 0
  %468 = vmatmul.mubr.bf16.gmra.mrb[0].mxu0 %v267
  %v469 = vpop.f32.mrb[0].mxu0
  %v470 = vadd.f32 0.0, %v469
  %v471 = vpop.f32.mrb[0].mxu0
  %v472 = vpop.f32.mrb[0].mxu0
  %v473 = vadd.f32 0.0, %v472
  %v474 = vpop.f32.mrb[0].mxu0
  %475 = vmatprep.mubr.bf16.mxu0 0
  %476 = vmatmul.mubr.bf16.gmra.mrb[0].mxu0 %v270
  %v477 = vpop.f32.mrb[0].mxu0
  %v478 = vadd.f32 0.0, %v477
  %v479 = vpop.f32.mrb[0].mxu0
  %v480 = vpop.f32.mrb[0].mxu0
  %v481 = vadd.f32 0.0, %v480
  %v482 = vpop.f32.mrb[0].mxu0
  %483 = vmatprep.mubr.bf16.mxu0 0
  %484 = vmatmul.mubr.bf16.gmra.mrb[0].mxu0 %v273
  %v485 = vpop.f32.mrb[0].mxu0
  %v486 = vadd.f32 0.0, %v485
  %v487 = vpop.f32.mrb[0].mxu0
  %v488 = vpop.f32.mrb[0].mxu0
  %v489 = vadd.f32 0.0, %v488
  %v490 = vpop.f32.mrb[0].mxu0
  %491 = vmatprep.mubr.bf16.mxu0 0
  %492 = vmatmul.mubr.bf16.gmra.mrb[0].mxu0 %v276
  %v493 = vpop.f32.mrb[0].mxu0
  %v494 = vadd.f32 0.0, %v493
  %v495 = vpop.f32.mrb[0].mxu0
  %v496 = vpop.f32.mrb[0].mxu0
  %v497 = vadd.f32 0.0, %v496
  %v498 = vpop.f32.mrb[0].mxu0
  %499 = vmatprep.mubr.bf16.mxu0 0
  %500 = vmatmul.mubr.bf16.gmra.mrb[0].mxu0 %v279
  %v501 = vpop.f32.mrb[0].mxu0
  %v502 = vadd.f32 0.0, %v501
  %v503 = vpop.f32.mrb[0].mxu0
  %v504 = vpop.f32.mrb[0].mxu0
  %v505 = vadd.f32 0.0, %v504
  %v506 = vpop.f32.mrb[0].mxu0
  %507 = vmatprep.mubr.bf16.mxu0 0
  %508 = vmatmul.mubr.bf16.gmra.mrb[0].mxu0 %v282
  %v509 = vpop.f32.mrb[0].mxu0
  %v510 = vadd.f32 0.0, %v509
  %v511 = vpop.f32.mrb[0].mxu0
  %v512 = vpop.f32.mrb[0].mxu0
  %v513 = vadd.f32 0.0, %v512
  %v514 = vpop.f32.mrb[0].mxu0
  %515 = vmatprep.mubr.bf16.mxu0 0
  %516 = vmatmul.mubr.bf16.gmra.mrb[0].mxu0 %v285
  %v517 = vpop.f32.mrb[0].mxu0
  %v518 = vadd.f32 0.0, %v517
  %v519 = vpop.f32.mrb[0].mxu0
  %v520 = vpop.f32.mrb[0].mxu0
  %v521 = vpop.f32.mrb[0].mxu0
  %522 = vdwg.mxu0
  %v523 = vmax.f32 %v326, 0.0
  %v524 = vmax.f32 %v329, 0.0
  %v525 = vmax.f32 %v334, 0.0
  %v526 = vmax.f32 %v337, 0.0
  %v527 = vmax.f32 %v342, 0.0
  %v528 = vmax.f32 %v345, 0.0
  %v529 = vmax.f32 %v350, 0.0
  %v530 = vmax.f32 %v353, 0.0
  %v531 = vmax.f32 %v358, 0.0
  %v532 = vmax.f32 %v361, 0.0
  %v533 = vmax.f32 %v366, 0.0
  %v534 = vmax.f32 %v369, 0.0
  %v535 = vmax.f32 %v374, 0.0
  %v536 = vmax.f32 %v377, 0.0
  %v537 = vmax.f32 %v382, 0.0
  %v538 = vmax.f32 %v385, 0.0
  %v539 = vmax.f32 %v390, 0.0
  %v540 = vmax.f32 %v393, 0.0
  %v541 = vmax.f32 %v398, 0.0
  %v542 = vmax.f32 %v401, 0.0
  %v543 = vmax.f32 %v406, 0.0
  %v544 = vmax.f32 %v409, 0.0
  %v545 = vmax.f32 %v414, 0.0
  %v546 = vmax.f32 %v417, 0.0
  %v547 = vmax.f32 %v422, 0.0
  %v548 = vmax.f32 %v425, 0.0
  %v549 = vmax.f32 %v430, 0.0
  %v550 = vmax.f32 %v433, 0.0
  %v551 = vmax.f32 %v438, 0.0
  %v552 = vmax.f32 %v441, 0.0
  %v553 = vmax.f32 %v446, 0.0
  %v554 = vmax.f32 %v449, 0.0
  %v555 = vmax.f32 %v454, 0.0
  %v556 = vmax.f32 %v457, 0.0
  %v557 = vmax.f32 %v462, 0.0
  %v558 = vmax.f32 %v465, 0.0
  %v559 = vmax.f32 %v470, 0.0
  %v560 = vmax.f32 %v473, 0.0
  %v561 = vmax.f32 %v478, 0.0
  %v562 = vmax.f32 %v481, 0.0
  %v563 = vmax.f32 %v486, 0.0
  %v564 = vmax.f32 %v489, 0.0
  %v565 = vmax.f32 %v494, 0.0
  %v566 = vmax.f32 %v497, 0.0
  %v567 = vmax.f32 %v502, 0.0
  %v568 = vmax.f32 %v505, 0.0
  %v569 = vmax.f32 %v510, 0.0
  %v570 = vmax.f32 %v513, 0.0
  %v571 = vmax.f32 %v518, 0.0
  %v572 = vpack.c.bf16 %v524, %v523
  %v573 = vpack.c.bf16 %v526, %v525
  %v574 = vpack.c.bf16 %v528, %v527
  %v575 = vpack.c.bf16 %v530, %v529
  %v576 = vpack.c.bf16 %v532, %v531
  %v577 = vpack.c.bf16 %v534, %v533
  %v578 = vpack.c.bf16 %v536, %v535
  %v579 = vpack.c.bf16 %v538, %v537
  %v580 = vpack.c.bf16 %v540, %v539
  %v581 = vpack.c.bf16 %v542, %v541
  %v582 = vpack.c.bf16 %v544, %v543
  %v583 = vpack.c.bf16 %v546, %v545
  %v584 = vpack.c.bf16 %v548, %v547
  %v585 = vpack.c.bf16 %v550, %v549
  %v586 = vpack.c.bf16 %v552, %v551
  %v587 = vpack.c.bf16 %v554, %v553
  %v588 = vpack.c.bf16 %v556, %v555
  %v589 = vpack.c.bf16 %v558, %v557
  %v590 = vpack.c.bf16 %v560, %v559
  %v591 = vpack.c.bf16 %v562, %v561
  %v592 = vpack.c.bf16 %v564, %v563
  %v593 = vpack.c.bf16 %v566, %v565
  %v594 = vpack.c.bf16 %v568, %v567
  %v595 = vpack.c.bf16 %v570, %v569
  %v596 = vpack.c.bf16 %v571, %v571
  %v597 = vld [vmem:[%s3] sm:$0xf]
  %v598 = vld [vmem:[%s3 + $0x4] sm:$0xf]
  %v599 = vld [vmem:[%s3 + $0x8] sm:$0xf]
  %v600 = vld [vmem:[%s3 + $0xc] sm:$0xf]
  %v601 = vld [vmem:[%s3 + $0x10] sm:$0xf]
  %v602 = vld [vmem:[%s3 + $0x14] sm:$0xf]
  %v603 = vld [vmem:[%s3 + $0x18] sm:$0xf]
  %v604 = vld [vmem:[%s3 + $0x1c] sm:$0xf]
  %s605 = sld [smem:[#allocation2]]
  %v606 = vstv %s605
  %v615 = vunpack.c.l.b16 %v597
  %v616 = vunpack.c.l.b16 %v598
  %v617 = vunpack.c.l.b16 %v599
  %v618 = vunpack.c.l.b16 %v600
  %v619 = vunpack.c.l.b16 %v601
  %v620 = vunpack.c.l.b16 %v602
  %v621 = vunpack.c.l.b16 %v603
  %v622 = vunpack.c.l.b16 %v604
  %v623 = vpack.c.b16 %v616, %v615
  %v624 = vpack.c.b16 %v618, %v617
  %v625 = vpack.c.b16 %v620, %v619
  %v626 = vpack.c.b16 %v622, %v621
  %vm631 = vcmask 523264
  %v633 = vsel %vm631, %v572, 0
  %v636 = vsel %vm631, %v573, 0
  %v639 = vsel %vm631, %v574, 0
  %v642 = vsel %vm631, %v575, 0
  %v645 = vsel %vm631, %v576, 0
  %v648 = vsel %vm631, %v577, 0
  %v651 = vsel %vm631, %v578, 0
  %v654 = vsel %vm631, %v579, 0
  %v657 = vsel %vm631, %v580, 0
  %v660 = vsel %vm631, %v581, 0
  %v663 = vsel %vm631, %v582, 0
  %v666 = vsel %vm631, %v583, 0
  %v669 = vsel %vm631, %v584, 0
  %v672 = vsel %vm631, %v585, 0
  %v675 = vsel %vm631, %v586, 0
  %v678 = vsel %vm631, %v587, 0
  %v681 = vsel %vm631, %v588, 0
  %v684 = vsel %vm631, %v589, 0
  %v687 = vsel %vm631, %v590, 0
  %v690 = vsel %vm631, %v591, 0
  %v693 = vsel %vm631, %v592, 0
  %v696 = vsel %vm631, %v593, 0
  %v699 = vsel %vm631, %v594, 0
  %v702 = vsel %vm631, %v595, 0
  %v705 = vsel %vm631, %v596, 0
  %707 = vmatprep.subr.bf16.mxu0 0
  %708 = vmatpush1.bf16.msra.mxu0 %v623
  %709 = vmatprep.subr.bf16.mxu0 0
  %710 = vmatpush1.bf16.msra.mxu0 %v624
  %711 = vmatprep.subr.bf16.mxu0 0
  %712 = vmatpush1.bf16.msra.mxu0 %v625
  %713 = vmatprep.subr.bf16.mxu0 0
  %714 = vmatpush1.bf16.msra.mxu0 %v626
  %715 = vmatprep.subr.bf16.mxu0 0
  %716 = vmatpush1.bf16.msra.mxu0 0
  %717 = vmatprep.subr.bf16.mxu0 0
  %718 = vmatpush1.bf16.msra.mxu0 0
  %719 = vmatprep.subr.bf16.mxu0 0
  %720 = vmatpush1.bf16.msra.mxu0 0
  %721 = vmatprep.subr.bf16.mxu0 0
  %722 = vmatpush1.bf16.msra.mxu0 0
  %723 = vmatprep.subr.bf16.mxu0 0
  %724 = vmatpush1.bf16.msra.mxu0 0
  %725 = vmatprep.subr.bf16.mxu0 0
  %726 = vmatpush1.bf16.msra.mxu0 0
  %727 = vmatprep.subr.bf16.mxu0 0
  %728 = vmatpush1.bf16.msra.mxu0 0
  %729 = vmatprep.subr.bf16.mxu0 0
  %730 = vmatpush1.bf16.msra.mxu0 0
  %731 = vmatprep.subr.bf16.mxu0 0
  %732 = vmatpush1.bf16.msra.mxu0 0
  %733 = vmatprep.subr.bf16.mxu0 0
  %734 = vmatpush1.bf16.msra.mxu0 0
  %735 = vmatprep.subr.bf16.mxu0 0
  %736 = vmatpush1.bf16.msra.mxu0 0
  %737 = vmatprep.subr.bf16.mxu0 0
  %738 = vmatpush1.bf16.msra.mxu0 0
  %739 = vmatprep.mubr.bf16.mxu0 0
  %740 = vmatmul.mubr.bf16.gmra.mrb[0].mxu0 %v633
  %v741 = vpop.f32.mrb[0].mxu0
  %v742 = vadd.f32 %v606, %v741
  %v743 = vpop.f32.mrb[0].mxu0
  %v744 = vpop.f32.mrb[0].mxu0
  %v745 = vadd.f32 %v606, %v744
  %v746 = vpop.f32.mrb[0].mxu0
  %747 = vmatprep.mubr.bf16.mxu0 0
  %748 = vmatmul.mubr.bf16.gmra.mrb[0].mxu0 %v636
  %v749 = vpop.f32.mrb[0].mxu0
  %v750 = vadd.f32 %v606, %v749
  %v751 = vpop.f32.mrb[0].mxu0
  %v752 = vpop.f32.mrb[0].mxu0
  %v753 = vadd.f32 %v606, %v752
  %v754 = vpop.f32.mrb[0].mxu0
  %755 = vmatprep.mubr.bf16.mxu0 0
  %756 = vmatmul.mubr.bf16.gmra.mrb[0].mxu0 %v639
  %v757 = vpop.f32.mrb[0].mxu0
  %v758 = vadd.f32 %v606, %v757
  %v759 = vpop.f32.mrb[0].mxu0
  %v760 = vpop.f32.mrb[0].mxu0
  %v761 = vadd.f32 %v606, %v760
  %v762 = vpop.f32.mrb[0].mxu0
  %763 = vmatprep.mubr.bf16.mxu0 0
  %764 = vmatmul.mubr.bf16.gmra.mrb[0].mxu0 %v642
  %v765 = vpop.f32.mrb[0].mxu0
  %v766 = vadd.f32 %v606, %v765
  %v767 = vpop.f32.mrb[0].mxu0
  %v768 = vpop.f32.mrb[0].mxu0
  %v769 = vadd.f32 %v606, %v768
  %v770 = vpop.f32.mrb[0].mxu0
  %771 = vmatprep.mubr.bf16.mxu0 0
  %772 = vmatmul.mubr.bf16.gmra.mrb[0].mxu0 %v645
  %v773 = vpop.f32.mrb[0].mxu0
  %v774 = vadd.f32 %v606, %v773
  %v775 = vpop.f32.mrb[0].mxu0
  %v776 = vpop.f32.mrb[0].mxu0
  %v777 = vadd.f32 %v606, %v776
  %v778 = vpop.f32.mrb[0].mxu0
  %779 = vmatprep.mubr.bf16.mxu0 0
  %780 = vmatmul.mubr.bf16.gmra.mrb[0].mxu0 %v648
  %v781 = vpop.f32.mrb[0].mxu0
  %v782 = vadd.f32 %v606, %v781
  %v783 = vpop.f32.mrb[0].mxu0
  %v784 = vpop.f32.mrb[0].mxu0
  %v785 = vadd.f32 %v606, %v784
  %v786 = vpop.f32.mrb[0].mxu0
  %787 = vmatprep.mubr.bf16.mxu0 0
  %788 = vmatmul.mubr.bf16.gmra.mrb[0].mxu0 %v651
  %v789 = vpop.f32.mrb[0].mxu0
  %v790 = vadd.f32 %v606, %v789
  %v791 = vpop.f32.mrb[0].mxu0
  %v792 = vpop.f32.mrb[0].mxu0
  %v793 = vadd.f32 %v606, %v792
  %v794 = vpop.f32.mrb[0].mxu0
  %795 = vmatprep.mubr.bf16.mxu0 0
  %796 = vmatmul.mubr.bf16.gmra.mrb[0].mxu0 %v654
  %v797 = vpop.f32.mrb[0].mxu0
  %v798 = vadd.f32 %v606, %v797
  %v799 = vpop.f32.mrb[0].mxu0
  %v800 = vpop.f32.mrb[0].mxu0
  %v801 = vadd.f32 %v606, %v800
  %v802 = vpop.f32.mrb[0].mxu0
  %803 = vmatprep.mubr.bf16.mxu0 0
  %804 = vmatmul.mubr.bf16.gmra.mrb[0].mxu0 %v657
  %v805 = vpop.f32.mrb[0].mxu0
  %v806 = vadd.f32 %v606, %v805
  %v807 = vpop.f32.mrb[0].mxu0
  %v808 = vpop.f32.mrb[0].mxu0
  %v809 = vadd.f32 %v606, %v808
  %v810 = vpop.f32.mrb[0].mxu0
  %811 = vmatprep.mubr.bf16.mxu0 0
  %812 = vmatmul.mubr.bf16.gmra.mrb[0].mxu0 %v660
  %v813 = vpop.f32.mrb[0].mxu0
  %v814 = vadd.f32 %v606, %v813
  %v815 = vpop.f32.mrb[0].mxu0
  %v816 = vpop.f32.mrb[0].mxu0
  %v817 = vadd.f32 %v606, %v816
  %v818 = vpop.f32.mrb[0].mxu0
  %819 = vmatprep.mubr.bf16.mxu0 0
  %820 = vmatmul.mubr.bf16.gmra.mrb[0].mxu0 %v663
  %v821 = vpop.f32.mrb[0].mxu0
  %v822 = vadd.f32 %v606, %v821
  %v823 = vpop.f32.mrb[0].mxu0
  %v824 = vpop.f32.mrb[0].mxu0
  %v825 = vadd.f32 %v606, %v824
  %v826 = vpop.f32.mrb[0].mxu0
  %827 = vmatprep.mubr.bf16.mxu0 0
  %828 = vmatmul.mubr.bf16.gmra.mrb[0].mxu0 %v666
  %v829 = vpop.f32.mrb[0].mxu0
  %v830 = vadd.f32 %v606, %v829
  %v831 = vpop.f32.mrb[0].mxu0
  %v832 = vpop.f32.mrb[0].mxu0
  %v833 = vadd.f32 %v606, %v832
  %v834 = vpop.f32.mrb[0].mxu0
  %835 = vmatprep.mubr.bf16.mxu0 0
  %836 = vmatmul.mubr.bf16.gmra.mrb[0].mxu0 %v669
  %v837 = vpop.f32.mrb[0].mxu0
  %v838 = vadd.f32 %v606, %v837
  %v839 = vpop.f32.mrb[0].mxu0
  %v840 = vpop.f32.mrb[0].mxu0
  %v841 = vadd.f32 %v606, %v840
  %v842 = vpop.f32.mrb[0].mxu0
  %843 = vmatprep.mubr.bf16.mxu0 0
  %844 = vmatmul.mubr.bf16.gmra.mrb[0].mxu0 %v672
  %v845 = vpop.f32.mrb[0].mxu0
  %v846 = vadd.f32 %v606, %v845
  %v847 = vpop.f32.mrb[0].mxu0
  %v848 = vpop.f32.mrb[0].mxu0
  %v849 = vadd.f32 %v606, %v848
  %v850 = vpop.f32.mrb[0].mxu0
  %851 = vmatprep.mubr.bf16.mxu0 0
  %852 = vmatmul.mubr.bf16.gmra.mrb[0].mxu0 %v675
  %v853 = vpop.f32.mrb[0].mxu0
  %v854 = vadd.f32 %v606, %v853
  %v855 = vpop.f32.mrb[0].mxu0
  %v856 = vpop.f32.mrb[0].mxu0
  %v857 = vadd.f32 %v606, %v856
  %v858 = vpop.f32.mrb[0].mxu0
  %859 = vmatprep.mubr.bf16.mxu0 0
  %860 = vmatmul.mubr.bf16.gmra.mrb[0].mxu0 %v678
  %v861 = vpop.f32.mrb[0].mxu0
  %v862 = vadd.f32 %v606, %v861
  %v863 = vpop.f32.mrb[0].mxu0
  %v864 = vpop.f32.mrb[0].mxu0
  %v865 = vadd.f32 %v606, %v864
  %v866 = vpop.f32.mrb[0].mxu0
  %867 = vmatprep.mubr.bf16.mxu0 0
  %868 = vmatmul.mubr.bf16.gmra.mrb[0].mxu0 %v681
  %v869 = vpop.f32.mrb[0].mxu0
  %v870 = vadd.f32 %v606, %v869
  %v871 = vpop.f32.mrb[0].mxu0
  %v872 = vpop.f32.mrb[0].mxu0
  %v873 = vadd.f32 %v606, %v872
  %v874 = vpop.f32.mrb[0].mxu0
  %875 = vmatprep.mubr.bf16.mxu0 0
  %876 = vmatmul.mubr.bf16.gmra.mrb[0].mxu0 %v684
  %v877 = vpop.f32.mrb[0].mxu0
  %v878 = vadd.f32 %v606, %v877
  %v879 = vpop.f32.mrb[0].mxu0
  %v880 = vpop.f32.mrb[0].mxu0
  %v881 = vadd.f32 %v606, %v880
  %v882 = vpop.f32.mrb[0].mxu0
  %883 = vmatprep.mubr.bf16.mxu0 0
  %884 = vmatmul.mubr.bf16.gmra.mrb[0].mxu0 %v687
  %v885 = vpop.f32.mrb[0].mxu0
  %v886 = vadd.f32 %v606, %v885
  %v887 = vpop.f32.mrb[0].mxu0
  %v888 = vpop.f32.mrb[0].mxu0
  %v889 = vadd.f32 %v606, %v888
  %v890 = vpop.f32.mrb[0].mxu0
  %891 = vmatprep.mubr.bf16.mxu0 0
  %892 = vmatmul.mubr.bf16.gmra.mrb[0].mxu0 %v690
  %v893 = vpop.f32.mrb[0].mxu0
  %v894 = vadd.f32 %v606, %v893
  %v895 = vpop.f32.mrb[0].mxu0
  %v896 = vpop.f32.mrb[0].mxu0
  %v897 = vadd.f32 %v606, %v896
  %v898 = vpop.f32.mrb[0].mxu0
  %899 = vmatprep.mubr.bf16.mxu0 0
  %900 = vmatmul.mubr.bf16.gmra.mrb[0].mxu0 %v693
  %v901 = vpop.f32.mrb[0].mxu0
  %v902 = vadd.f32 %v606, %v901
  %v903 = vpop.f32.mrb[0].mxu0
  %v904 = vpop.f32.mrb[0].mxu0
  %v905 = vadd.f32 %v606, %v904
  %v906 = vpop.f32.mrb[0].mxu0
  %907 = vmatprep.mubr.bf16.mxu0 0
  %908 = vmatmul.mubr.bf16.gmra.mrb[0].mxu0 %v696
  %v909 = vpop.f32.mrb[0].mxu0
  %v910 = vadd.f32 %v606, %v909
  %v911 = vpop.f32.mrb[0].mxu0
  %v912 = vpop.f32.mrb[0].mxu0
  %v913 = vadd.f32 %v606, %v912
  %v914 = vpop.f32.mrb[0].mxu0
  %915 = vmatprep.mubr.bf16.mxu0 0
  %916 = vmatmul.mubr.bf16.gmra.mrb[0].mxu0 %v699
  %v917 = vpop.f32.mrb[0].mxu0
  %v918 = vadd.f32 %v606, %v917
  %v919 = vpop.f32.mrb[0].mxu0
  %v920 = vpop.f32.mrb[0].mxu0
  %v921 = vadd.f32 %v606, %v920
  %v922 = vpop.f32.mrb[0].mxu0
  %923 = vmatprep.mubr.bf16.mxu0 0
  %924 = vmatmul.mubr.bf16.gmra.mrb[0].mxu0 %v702
  %v925 = vpop.f32.mrb[0].mxu0
  %v926 = vadd.f32 %v606, %v925
  %v927 = vpop.f32.mrb[0].mxu0
  %v928 = vpop.f32.mrb[0].mxu0
  %v929 = vadd.f32 %v606, %v928
  %v930 = vpop.f32.mrb[0].mxu0
  %931 = vmatprep.mubr.bf16.mxu0 0
  %932 = vmatmul.mubr.bf16.gmra.mrb[0].mxu0 %v705
  %v933 = vpop.f32.mrb[0].mxu0
  %v934 = vadd.f32 %v606, %v933
  %v935 = vpop.f32.mrb[0].mxu0
  %v936 = vpop.f32.mrb[0].mxu0
  %v937 = vpop.f32.mrb[0].mxu0
  %938 = vdwg.mxu0
  %v939 = vpack.c.bf16 %v745, %v742
  %v940 = vpack.c.bf16 %v753, %v750
  %v941 = vpack.c.bf16 %v761, %v758
  %v942 = vpack.c.bf16 %v769, %v766
  %v943 = vpack.c.bf16 %v777, %v774
  %v944 = vpack.c.bf16 %v785, %v782
  %v945 = vpack.c.bf16 %v793, %v790
  %v946 = vpack.c.bf16 %v801, %v798
  %v947 = vpack.c.bf16 %v809, %v806
  %v948 = vpack.c.bf16 %v817, %v814
  %v949 = vpack.c.bf16 %v825, %v822
  %v950 = vpack.c.bf16 %v833, %v830
  %v951 = vpack.c.bf16 %v841, %v838
  %v952 = vpack.c.bf16 %v849, %v846
  %v953 = vpack.c.bf16 %v857, %v854
  %v954 = vpack.c.bf16 %v865, %v862
  %v955 = vpack.c.bf16 %v873, %v870
  %v956 = vpack.c.bf16 %v881, %v878
  %v957 = vpack.c.bf16 %v889, %v886
  %v958 = vpack.c.bf16 %v897, %v894
  %v959 = vpack.c.bf16 %v905, %v902
  %v960 = vpack.c.bf16 %v913, %v910
  %v961 = vpack.c.bf16 %v921, %v918
  %v962 = vpack.c.bf16 %v929, %v926
  %v963 = vpack.c.bf16 %v934, %v934
  %v989 = vunpack.c.l.b16 %v939
  %v990 = vunpack.c.h.b16 %v939
  %v991 = vunpack.c.l.b16 %v940
  %v992 = vunpack.c.h.b16 %v940
  %v993 = vunpack.c.l.b16 %v941
  %v994 = vunpack.c.h.b16 %v941
  %v995 = vunpack.c.l.b16 %v942
  %v996 = vunpack.c.h.b16 %v942
  %v997 = vunpack.c.l.b16 %v943
  %v998 = vunpack.c.h.b16 %v943
  %v999 = vunpack.c.l.b16 %v944
  %v1000 = vunpack.c.h.b16 %v944
  %v1001 = vunpack.c.l.b16 %v945
  %v1002 = vunpack.c.h.b16 %v945
  %v1003 = vunpack.c.l.b16 %v946
  %v1004 = vunpack.c.h.b16 %v946
  %v1005 = vunpack.c.l.b16 %v947
  %v1006 = vunpack.c.h.b16 %v947
  %v1007 = vunpack.c.l.b16 %v948
  %v1008 = vunpack.c.h.b16 %v948
  %v1009 = vunpack.c.l.b16 %v949
  %v1010 = vunpack.c.h.b16 %v949
  %v1011 = vunpack.c.l.b16 %v950
  %v1012 = vunpack.c.h.b16 %v950
  %v1013 = vunpack.c.l.b16 %v951
  %v1014 = vunpack.c.h.b16 %v951
  %v1015 = vunpack.c.l.b16 %v952
  %v1016 = vunpack.c.h.b16 %v952
  %v1017 = vunpack.c.l.b16 %v953
  %v1018 = vunpack.c.h.b16 %v953
  %v1019 = vunpack.c.l.b16 %v954
  %v1020 = vunpack.c.h.b16 %v954
  %v1021 = vunpack.c.l.b16 %v955
  %v1022 = vunpack.c.h.b16 %v955
  %v1023 = vunpack.c.l.b16 %v956
  %v1024 = vunpack.c.h.b16 %v956
  %v1025 = vunpack.c.l.b16 %v957
  %v1026 = vunpack.c.h.b16 %v957
  %v1027 = vunpack.c.l.b16 %v958
  %v1028 = vunpack.c.h.b16 %v958
  %v1029 = vunpack.c.l.b16 %v959
  %v1030 = vunpack.c.h.b16 %v959
  %v1031 = vunpack.c.l.b16 %v960
  %v1032 = vunpack.c.h.b16 %v960
  %v1033 = vunpack.c.l.b16 %v961
  %v1034 = vunpack.c.h.b16 %v961
  %v1035 = vunpack.c.l.b16 %v962
  %v1036 = vunpack.c.h.b16 %v962
  %v1037 = vunpack.c.l.b16 %v963
  %v1038 = vpack.c.b16 %v989, %v989
  %v1039 = vpack.c.b16 %v990, %v990
  %v1040 = vpack.c.b16 %v991, %v991
  %v1041 = vpack.c.b16 %v992, %v992
  %v1042 = vpack.c.b16 %v993, %v993
  %v1043 = vpack.c.b16 %v994, %v994
  %v1044 = vpack.c.b16 %v995, %v995
  %v1045 = vpack.c.b16 %v996, %v996
  %v1046 = vpack.c.b16 %v997, %v997
  %v1047 = vpack.c.b16 %v998, %v998
  %v1048 = vpack.c.b16 %v999, %v999
  %v1049 = vpack.c.b16 %v1000, %v1000
  %v1050 = vpack.c.b16 %v1001, %v1001
  %v1051 = vpack.c.b16 %v1002, %v1002
  %v1052 = vpack.c.b16 %v1003, %v1003
  %v1053 = vpack.c.b16 %v1004, %v1004
  %v1054 = vpack.c.b16 %v1005, %v1005
  %v1055 = vpack.c.b16 %v1006, %v1006
  %v1056 = vpack.c.b16 %v1007, %v1007
  %v1057 = vpack.c.b16 %v1008, %v1008
  %v1058 = vpack.c.b16 %v1009, %v1009
  %v1059 = vpack.c.b16 %v1010, %v1010
  %v1060 = vpack.c.b16 %v1011, %v1011
  %v1061 = vpack.c.b16 %v1012, %v1012
  %v1062 = vpack.c.b16 %v1013, %v1013
  %v1063 = vpack.c.b16 %v1014, %v1014
  %v1064 = vpack.c.b16 %v1015, %v1015
  %v1065 = vpack.c.b16 %v1016, %v1016
  %v1066 = vpack.c.b16 %v1017, %v1017
  %v1067 = vpack.c.b16 %v1018, %v1018
  %v1068 = vpack.c.b16 %v1019, %v1019
  %v1069 = vpack.c.b16 %v1020, %v1020
  %v1070 = vpack.c.b16 %v1021, %v1021
  %v1071 = vpack.c.b16 %v1022, %v1022
  %v1072 = vpack.c.b16 %v1023, %v1023
  %v1073 = vpack.c.b16 %v1024, %v1024
  %v1074 = vpack.c.b16 %v1025, %v1025
  %v1075 = vpack.c.b16 %v1026, %v1026
  %v1076 = vpack.c.b16 %v1027, %v1027
  %v1077 = vpack.c.b16 %v1028, %v1028
  %v1078 = vpack.c.b16 %v1029, %v1029
  %v1079 = vpack.c.b16 %v1030, %v1030
  %v1080 = vpack.c.b16 %v1031, %v1031
  %v1081 = vpack.c.b16 %v1032, %v1032
  %v1082 = vpack.c.b16 %v1033, %v1033
  %v1083 = vpack.c.b16 %v1034, %v1034
  %v1084 = vpack.c.b16 %v1035, %v1035
  %v1085 = vpack.c.b16 %v1036, %v1036
  %v1086 = vpack.c.b16 %v1037, %v1037
  %1136 = vst [vmem:[%s4] sm:$0xf] %v1038
  %1137 = vst [vmem:[%s4 + $0x4] sm:$0xf] %v1039
  %1138 = vst [vmem:[%s4 + $0x8] sm:$0xf] %v1040
  %1139 = vst [vmem:[%s4 + $0xc] sm:$0xf] %v1041
  %1140 = vst [vmem:[%s4 + $0x10] sm:$0xf] %v1042
  %1141 = vst [vmem:[%s4 + $0x14] sm:$0xf] %v1043
  %1142 = vst [vmem:[%s4 + $0x18] sm:$0xf] %v1044
  %1143 = vst [vmem:[%s4 + $0x1c] sm:$0xf] %v1045
  %1144 = vst [vmem:[%s4 + $0x20] sm:$0xf] %v1046
  %1145 = vst [vmem:[%s4 + $0x24] sm:$0xf] %v1047
  %1146 = vst [vmem:[%s4 + $0x28] sm:$0xf] %v1048
  %1147 = vst [vmem:[%s4 + $0x2c] sm:$0xf] %v1049
  %1148 = vst [vmem:[%s4 + $0x30] sm:$0xf] %v1050
  %1149 = vst [vmem:[%s4 + $0x34] sm:$0xf] %v1051
  %1150 = vst [vmem:[%s4 + $0x38] sm:$0xf] %v1052
  %1151 = vst [vmem:[%s4 + $0x3c] sm:$0xf] %v1053
  %1152 = vst [vmem:[%s4 + $0x40] sm:$0xf] %v1054
  %1153 = vst [vmem:[%s4 + $0x44] sm:$0xf] %v1055
  %1154 = vst [vmem:[%s4 + $0x48] sm:$0xf] %v1056
  %1155 = vst [vmem:[%s4 + $0x4c] sm:$0xf] %v1057
  %1156 = vst [vmem:[%s4 + $0x50] sm:$0xf] %v1058
  %1157 = vst [vmem:[%s4 + $0x54] sm:$0xf] %v1059
  %1158 = vst [vmem:[%s4 + $0x58] sm:$0xf] %v1060
  %1159 = vst [vmem:[%s4 + $0x5c] sm:$0xf] %v1061
  %1160 = vst [vmem:[%s4 + $0x60] sm:$0xf] %v1062
  %1161 = vst [vmem:[%s4 + $0x64] sm:$0xf] %v1063
  %1162 = vst [vmem:[%s4 + $0x68] sm:$0xf] %v1064
  %1163 = vst [vmem:[%s4 + $0x6c] sm:$0xf] %v1065
  %1164 = vst [vmem:[%s4 + $0x70] sm:$0xf] %v1066
  %1165 = vst [vmem:[%s4 + $0x74] sm:$0xf] %v1067
  %1166 = vst [vmem:[%s4 + $0x78] sm:$0xf] %v1068
  %1167 = vst [vmem:[%s4 + $0x7c] sm:$0xf] %v1069
  %1168 = vst [vmem:[%s4 + $0x80] sm:$0xf] %v1070
  %1169 = vst [vmem:[%s4 + $0x84] sm:$0xf] %v1071
  %1170 = vst [vmem:[%s4 + $0x88] sm:$0xf] %v1072
  %1171 = vst [vmem:[%s4 + $0x8c] sm:$0xf] %v1073
  %1172 = vst [vmem:[%s4 + $0x90] sm:$0xf] %v1074
  %1173 = vst [vmem:[%s4 + $0x94] sm:$0xf] %v1075
  %1174 = vst [vmem:[%s4 + $0x98] sm:$0xf] %v1076
  %1175 = vst [vmem:[%s4 + $0x9c] sm:$0xf] %v1077
  %1176 = vst [vmem:[%s4 + $0xa0] sm:$0xf] %v1078
  %1177 = vst [vmem:[%s4 + $0xa4] sm:$0xf] %v1079
  %1178 = vst [vmem:[%s4 + $0xa8] sm:$0xf] %v1080
  %1179 = vst [vmem:[%s4 + $0xac] sm:$0xf] %v1081
  %1180 = vst [vmem:[%s4 + $0xb0] sm:$0xf] %v1082
  %1181 = vst [vmem:[%s4 + $0xb4] sm:$0xf] %v1083
  %1182 = vst [vmem:[%s4 + $0xb8] sm:$0xf] %v1084
  %1183 = vst [vmem:[%s4 + $0xbc] sm:$0xf] %v1085
  %1184 = vst [vmem:[%s4 + $0xc0] sm:$0xf] %v1086
  // Predicated region
  $region18: #{layer_lbc_forward.1} parent=0 // pred_check
    _
  $region19: #{layer_lbc_forward.1} parent=0 // pred_check_branch
    %1186 = sbr.rel (0) target = $region21
  $region20: #{layer_lbc_forward.1} parent=0 // pred_region
    _
  $region21: #{layer_lbc_forward.1} parent=0 // pred_fallthru
    _
  // Predicated region
  $region22: #{layer_lbc_forward.1} parent=0 // pred_check
    _
  $region23: #{layer_lbc_forward.1} parent=0 // pred_check_branch
    %1188 = sbr.rel (0) target = $region25
  $region24: #{layer_lbc_forward.1} parent=0 // pred_region
    _
  $region25: #{layer_lbc_forward.1} parent=0 // pred_fallthru
    _

</llo_original>
